<compile_context>
chip_gen: v5e
topology: v5e:2x2
jax: 0.10.0
libtpu: 0.0.40
codegen_flags: <defaults>
</compile_context>

<pallas_src>
import functools

import jax
import jax.numpy as jnp
from jax.experimental import pallas as pl
from jax.experimental.pallas import tpu as pltpu


# ~2 MiB per input block per pipeline buffer (2 inputs x 2 buffers ~= 8 MiB of
# VMEM): comfortably under the 32 MiB scoped default on every generation,
# including v7x's 64 MiB physical VMEM, while large enough to hide per-step
# overhead and approach the HBM roofline.
_TARGET_BLOCK_BYTES = 2 * 1024 * 1024


def _round_up(x: int, m: int) -> int:
    return ((x + m - 1) // m) * m


def _pnl_kernel(pos_ref, ret_ref, pnl_ref, *, l_total, l_blk, blocks_per_split,
                masked):
    """Accumulate sum_l pos*ret per batch row into the resident output block.

    pos_ref, ret_ref: (b_blk, l_blk) blocks of flattened positions / returns.
    pnl_ref:          (b_blk, 1) per-batch partial PnL for this lane split;
                      stays resident across the innermost (reduction) axis.
    """
    j = pl.program_id(2)  # sequential reduction over lane blocks

    @pl.when(j == 0)
    def _init():
        pnl_ref[...] = jnp.zeros_like(pnl_ref)

    # Pure-VPU multiply; upcast in-register (inputs may be bf16).
    x = pos_ref[...].astype(jnp.float32) * ret_ref[...].astype(jnp.float32)

    if masked:
        # Ragged lane tail / overflow steps of an uneven split: zero out lanes
        # past the true extent (garbage in the OOB region must not leak into
        # the sum).  limit may be <= 0 (fully masked) or > l_blk (no masking).
        g = pl.program_id(0) * blocks_per_split + j      # global lane-block idx
        limit = l_total - g * l_blk                      # scalar (SMEM) math
        lane = jax.lax.broadcasted_iota(jnp.int32, x.shape, 1)
        x = jnp.where(lane < limit, x, 0.0)

    # Per-step cross-lane reduce (XLU slot is otherwise idle); accumulate into
    # the tiny resident output block -> no full-width accumulator RMW traffic.
    pnl_ref[...] += jnp.sum(x, axis=-1, keepdims=True)


def _pnl_rows(positions, price, block_bytes=_TARGET_BLOCK_BYTES):
    """Per-batch-row PnL (float32, shape (B,)) via the Pallas kernel."""
    B, T, A = positions.shape
    assert price.shape == (B, T + 1, A), "price must broadcast with delta_pos"

    # Telescoped PnL: positions * (price[t+1] - price[t]); native dtype
    # (no wrapper f32 upcast -> no extra HBM traffic for bf16 inputs).
    rets = price[:, 1:, :] - price[:, :-1, :]            # (B, T, A)

    # Lane-dense flattening: the reduction runs over all of (T, A), so put the
    # whole T*A extent on the lane axis (small A does not waste vreg lanes).
    L = T * A
    pos2 = positions.reshape(B, L)                       # contiguous -> free
    ret2 = rets.reshape(B, L)

    itemsize = max(jnp.dtype(pos2.dtype).itemsize, jnp.dtype(ret2.dtype).itemsize)
    pack = max(1, 4 // itemsize)                         # sublane packing factor

    # Sublane block: 8 rows per 32-bit sublane (16 for bf16, 32 for int8);
    # never larger than B so every block dim is either (8,128)-aligned or
    # exactly the full array dim (no block ever exceeds the array extent).
    b_blk = min(8 * pack, B)

    # Lane block: as large as the VMEM budget allows.  8*pack*itemsize == 32 B
    # per lane-column of a (sublane-padded) tile for any 32/16/8-bit dtype.
    l_cap = max(128, (block_bytes // (8 * pack * itemsize)) // 128 * 128)
    if L < 128:
        l_blk = L                                        # full-dim block
    else:
        l_blk = min(l_cap, (L // 128) * 128)             # 128-multiple, <= L

    n_b = pl.cdiv(B, b_blk)
    n_l = pl.cdiv(L, l_blk)

    # v7x has 2 TensorCores: if there is only one batch block, split the lane
    # (reduction) axis into two parallel halves so both cores get work.
    n_split = 2 if (n_b == 1 and n_l >= 2) else 1
    bps = pl.cdiv(n_l, n_split)                          # lane blocks per split

    # Ragged lane tail and/or uneven split -> mask in-kernel (no pad copies).
    masked = (L % l_blk != 0) or (n_split * bps != n_l)
    max_blk = n_l - 1

    kernel = functools.partial(
        _pnl_kernel, l_total=L, l_blk=l_blk, blocks_per_split=bps, masked=masked)

    def in_map(s, i, j):
        # Clamp so overflow steps of an uneven split stay in bounds; those
        # steps are fully masked to zero inside the kernel.
        return (i, jnp.minimum(s * bps + j, max_blk))

    cost = pl.CostEstimate(
        flops=2 * B * L,
        transcendentals=0,
        bytes_accessed=(pos2.size * pos2.dtype.itemsize
                        + ret2.size * ret2.dtype.itemsize
                        + n_split * n_b * b_blk * 4),
    )

    pnl_part = pl.pallas_call(
        kernel,
        out_shape=jax.ShapeDtypeStruct((n_split, n_b * b_blk, 1), jnp.float32),
        grid_spec=pltpu.PrefetchScalarGridSpec(
            num_scalar_prefetch=0,
            grid=(n_split, n_b, bps),
            in_specs=[
                pl.BlockSpec((b_blk, l_blk), in_map),
                pl.BlockSpec((b_blk, l_blk), in_map),
            ],
            # Block index constant along the innermost (reduction) axis ->
            # the output block stays resident and is accumulated in place.
            out_specs=pl.BlockSpec((None, b_blk, 1), lambda s, i, j: (s, i, 0)),
        ),
        compiler_params=pltpu.CompilerParams(
            dimension_semantics=("parallel", "parallel", "arbitrary"),
            vmem_limit_bytes=32 * 1024 * 1024,
        ),
        cost_estimate=cost,
    )(pos2, ret2)

    # Sum the (<=2) parallel lane splits, then drop padded batch rows.
    return jnp.sum(pnl_part, axis=0)[:B, 0]              # (B,)


def sharpe_criterion(positions, inputs, loss_type: str = 'pnl', *,
                     block_bytes: int = _TARGET_BLOCK_BYTES):
    """JAX/Pallas equivalent of SharpeCriterion.forward (loss_type='pnl')."""
    if loss_type != 'pnl':
        raise ValueError(loss_type)

    pnl = _pnl_rows(positions, inputs['price'], block_bytes)
    pnl_sum = jnp.sum(pnl)
    loss = -pnl_sum
    # Keep metrics on-device (pnl_sum == -loss); callers can float() it lazily
    # instead of forcing a device->host sync on the dispatch path.
    metrics = {'pnl_sum': pnl_sum}
    return loss, metrics


def _reference(positions, price):
    """Pure-JAX reference mirroring the PyTorch code, for verification."""
    zero_pos = jnp.zeros_like(positions[:, :1, :])
    pos_pad = jnp.concatenate([zero_pos, positions, zero_pos], axis=1)
    delta_pos = pos_pad[:, 1:, :] - pos_pad[:, :-1, :]
    pnl_t = -1.0 * (delta_pos * price)
    pnl = pnl_t.sum(axis=1).sum(axis=1)
    loss = -1.0 * pnl.sum()
    return loss, pnl


if __name__ == "__main__":
    key = jax.random.PRNGKey(0)

    def _check(case_key, B, T, A, block_bytes=_TARGET_BLOCK_BYTES):
        k_pos, k_price = jax.random.split(case_key)
        positions = jax.random.normal(k_pos, (B, T, A), dtype=jnp.float32)
        price = 100.0 + jax.random.normal(k_price, (B, T + 1, A), dtype=jnp.float32)

        loss, metrics = sharpe_criterion(positions, {'price': price},
                                         loss_type='pnl', block_bytes=block_bytes)
        pnl_rows = _pnl_rows(positions, price, block_bytes)
        jax.block_until_ready((loss, metrics['pnl_sum'], pnl_rows))

        ref_loss, ref_pnl = _reference(positions, price)
        L = T * A
        atol = 2e-5 * L + 0.02
        assert jnp.allclose(pnl_rows, ref_pnl, rtol=5e-3, atol=atol), (
            (B, T, A), pnl_rows, ref_pnl)
        assert jnp.allclose(loss, ref_loss, rtol=5e-3, atol=atol * max(1, B)), (
            (B, T, A), float(loss), float(ref_loss))
        assert jnp.allclose(metrics['pnl_sum'], -ref_loss, rtol=5e-3,
                            atol=atol * max(1, B)), (B, T, A)

    keys = jax.random.split(key, 6)
    _check(keys[0], 2, 16, 8)                              # single (2,128) block
    _check(keys[1], 3, 10, 5)                              # L<128: full-dim block
    _check(keys[2], 8, 96, 64)                             # L=6144, one big block
    _check(keys[3], 8, 96, 64, block_bytes=8 * 1024 * 4)   # 2-way split, 3-step reduce
    _check(keys[4], 5, 77, 13, block_bytes=5 * 128 * 4)    # ragged lane tail + split
    _check(keys[5], 6, 99, 11, block_bytes=6 * 128 * 4)    # uneven split -> clamped step

    print("KERNEL_OK")
</pallas_src>

<mosaic_0001>
module attributes {stable_mosaic.version = 11 : i64} {
  func.func @_pnl_kernel(%arg0: i32, %arg1: i32, %arg2: i32, %arg3: memref<2x128xf32, #tpu.memory_space<vmem>>, %arg4: memref<2x128xf32, #tpu.memory_space<vmem>>, %arg5: memref<1x2x1xf32, #tpu.memory_space<vmem>>) attributes {dimension_semantics = [#tpu.dimension_semantics<parallel>, #tpu.dimension_semantics<parallel>, #tpu.dimension_semantics<arbitrary>], iteration_bounds = array<i64: 1, 1, 1>, scalar_prefetch = 0 : i64, scratch_operands = 0 : i64, tpu.core_type = #tpu.core_type<tc>, window_params = [{transform_indices = @transform_0, window_bounds = array<i64: 2, 128>}, {transform_indices = @transform_1, window_bounds = array<i64: 2, 128>}, {transform_indices = @transform_2, window_bounds = array<i64: 1, 2, 1>}]} {
    %c0_i32 = arith.constant 0 : i32
    %0 = arith.cmpi eq, %arg2, %c0_i32 : i32
    %1 = arith.extui %0 : i1 to i32
    %c0_i32_0 = arith.constant 0 : i32
    %2 = arith.cmpi ne, %1, %c0_i32_0 : i32
    scf.if %2 {
      %cst_10 = arith.constant 0.000000e+00 : f32
      %14 = vector.broadcast %cst_10 : f32 to vector<2x1xf32>
      %c0_11 = arith.constant 0 : index
      %c0_12 = arith.constant 0 : index
      %c0_13 = arith.constant 0 : index
      %15 = vector.load %arg5[%c0_11, %c0_12, %c0_13] : memref<1x2x1xf32, #tpu.memory_space<vmem>>, vector<1x2x1xf32>
      %16 = vector.shape_cast %15 : vector<1x2x1xf32> to vector<2x1xf32>
      %17 = vector.shape_cast %14 : vector<2x1xf32> to vector<1x2x1xf32>
      tpu.vector_store %arg5[%c0_11, %c0_12, %c0_13], %17 {strides = array<i32>} : memref<1x2x1xf32, #tpu.memory_space<vmem>>, vector<1x2x1xf32>,
    } else {
    }
    %c0 = arith.constant 0 : index
    %c0_1 = arith.constant 0 : index
    %3 = vector.load %arg3[%c0, %c0_1] : memref<2x128xf32, #tpu.memory_space<vmem>>, vector<2x128xf32>
    %c0_2 = arith.constant 0 : index
    %c0_3 = arith.constant 0 : index
    %4 = vector.load %arg4[%c0_2, %c0_3] : memref<2x128xf32, #tpu.memory_space<vmem>>, vector<2x128xf32>
    %5 = arith.mulf %3, %4 : vector<2x128xf32>
    %c0_4 = arith.constant 0 : index
    %c0_5 = arith.constant 0 : index
    %c0_6 = arith.constant 0 : index
    %6 = vector.load %arg5[%c0_4, %c0_5, %c0_6] : memref<1x2x1xf32, #tpu.memory_space<vmem>>, vector<1x2x1xf32>
    %7 = vector.shape_cast %6 : vector<1x2x1xf32> to vector<2x1xf32>
    %cst = arith.constant dense<0.000000e+00> : vector<2xf32>
    %8 = vector.multi_reduction <add>, %5, %cst [1] : vector<2x128xf32> to vector<2xf32>
    %9 = vector.shape_cast %8 : vector<2xf32> to vector<2x1xf32>
    %10 = arith.addf %7, %9 : vector<2x1xf32>
    %c0_7 = arith.constant 0 : index
    %c0_8 = arith.constant 0 : index
    %c0_9 = arith.constant 0 : index
    %11 = vector.load %arg5[%c0_7, %c0_8, %c0_9] : memref<1x2x1xf32, #tpu.memory_space<vmem>>, vector<1x2x1xf32>
    %12 = vector.shape_cast %11 : vector<1x2x1xf32> to vector<2x1xf32>
    %13 = vector.shape_cast %10 : vector<2x1xf32> to vector<1x2x1xf32>
    tpu.vector_store %arg5[%c0_7, %c0_8, %c0_9], %13 {strides = array<i32>} : memref<1x2x1xf32, #tpu.memory_space<vmem>>, vector<1x2x1xf32>,
    return
  }
  func.func @transform_0(%arg0: i32, %arg1: i32, %arg2: i32) -> (i32, i32) {
    %c1_i32 = arith.constant 1 : i32
    %0 = arith.muli %arg0, %c1_i32 : i32
    %1 = arith.addi %0, %arg2 : i32
    %c0_i32 = arith.constant 0 : i32
    %2 = arith.minsi %1, %c0_i32 : i32
    %c0_i32_0 = arith.constant 0 : i32
    return %arg1, %2 : i32, i32
  }
  func.func @transform_1(%arg0: i32, %arg1: i32, %arg2: i32) -> (i32, i32) {
    %c1_i32 = arith.constant 1 : i32
    %0 = arith.muli %arg0, %c1_i32 : i32
    %1 = arith.addi %0, %arg2 : i32
    %c0_i32 = arith.constant 0 : i32
    %2 = arith.minsi %1, %c0_i32 : i32
    %c0_i32_0 = arith.constant 0 : i32
    return %arg1, %2 : i32, i32
  }
  func.func @transform_2(%arg0: i32, %arg1: i32, %arg2: i32) -> (i32, i32, i32) {
    %c0_i32 = arith.constant 0 : i32
    %c0_i32_0 = arith.constant 0 : i32
    return %arg0, %arg1, %c0_i32 : i32, i32, i32
  }
}

</mosaic_0001>

<llo_original>
// kernel: tpu_custom_call.1
$region0: #{tpu_custom_call.1}
  #allocation0 [shape = 'u32[]', space=smem, size = 0x4, offset = 0x4, fixed_abs, tag = 'smem constant byte address 0x4 - core index']
  #allocation1 [shape = 'u32[72,128]{1,0:T(1,128)}', space=vmem, size = 0x9000, scoped, tag = 'internal scratch']
  %s0 = inlined_call_operand.hbm [shape: f32[2,128], index: 0, kind: input, shape index: {}]
  %s1 = inlined_call_operand.hbm [shape: f32[2,128], index: 1, kind: input, shape index: {}]
  %s2 = inlined_call_operand.vmem [shape: f32[1,2,1], index: 2, kind: output, shape index: {}]
  %s3 = sld [smem:[#allocation0]]
  $region30: #{tpu_custom_call.1} parent=0
    _
  %s5 = ssub.s32 1, %s3
  %s6 = scalar_select 0, %s5, %s3
  $region1: #{tpu_custom_call.1} parent=0
    #allocation2 [shape = 'u8[1024]{0}', space=vmem, size = 0x400, scoped, tag = 'input window, operand 0, single buffered']
    #allocation3 [shape = 's32[1]{0}', space=sflag, size = 0x4, scoped, tag = 'scoped memory for tpu_custom_call.1']
    #allocation4 [shape = 'u8[1024]{0}', space=vmem, size = 0x400, scoped, tag = 'input window, operand 1, single buffered']
    #allocation5 [shape = 's32[1]{0}', space=sflag, size = 0x4, scoped, tag = 'scoped memory for tpu_custom_call.1']
    %7 = vsyncpa [#allocation3], 0
    %8 = vsyncpa [#allocation5], 0
    // Predicated region
    $region2: #{tpu_custom_call.1} parent=1 // pred_check
      _
    $region3: #{tpu_custom_call.1} parent=1 // pred_check_branch
      %10 = sbr.rel (0) target = $region5
    $region4: #{tpu_custom_call.1} parent=1 // pred_region
      %s11 = sadd.s32 0, 0
      %p12 = scmp.lt.s32.totalorder %s11, 0
      %s13 = scalar_select %p12, %s11, 0
      %15 = vsyncadd [#allocation3], 0
      %s16 = smul.addr %s13, 2
      %s17 = scalar_lea.hbm %s0, %s16
      %s19 = sshll.u32 %s17, 4
      %s20 = int_to_ptr.hbm [resolvable:$true] %s19
      %s21 = sshll.u32 [#allocation2], 4
      %s22 = int_to_ptr.vmem [resolvable:$true] %s21
      %24 = dma.hbm_to_vmem [thread:$0]  %s20, 32, %s22, [#allocation3]
    $region5: #{tpu_custom_call.1} parent=1 // pred_fallthru
      _
    // Predicated region
    $region6: #{tpu_custom_call.1} parent=1 // pred_check
      _
    $region7: #{tpu_custom_call.1} parent=1 // pred_check_branch
      %26 = sbr.rel (0) target = $region9
    $region8: #{tpu_custom_call.1} parent=1 // pred_region
      %s27 = sadd.s32 0, 0
      %p28 = scmp.lt.s32.totalorder %s27, 0
      %s29 = scalar_select %p28, %s27, 0
      %31 = vsyncadd [#allocation5], 0
      %s32 = smul.addr %s29, 2
      %s33 = scalar_lea.hbm %s1, %s32
      %s35 = sshll.u32 %s33, 4
      %s36 = int_to_ptr.hbm [resolvable:$true] %s35
      %s37 = sshll.u32 [#allocation4], 4
      %s38 = int_to_ptr.vmem [resolvable:$true] %s37
      %40 = dma.hbm_to_vmem [thread:$0]  %s36, 32, %s38, [#allocation5]
    $region9: #{tpu_custom_call.1} parent=1 // pred_fallthru
      _
    // Predicated region
    $region10: #{tpu_custom_call.1} parent=1 // pred_check
      _
    $region11: #{tpu_custom_call.1} parent=1 // pred_check_branch
      %42 = sbr.rel (0) target = $region13
    $region12: #{tpu_custom_call.1} parent=1 // pred_region
      %44 = dma.done [#allocation3], 32
    $region13: #{tpu_custom_call.1} parent=1 // pred_fallthru
      _
    // Predicated region
    $region14: #{tpu_custom_call.1} parent=1 // pred_check
      _
    $region15: #{tpu_custom_call.1} parent=1 // pred_check_branch
      %46 = sbr.rel (0) target = $region17
    $region16: #{tpu_custom_call.1} parent=1 // pred_region
      %48 = dma.done [#allocation5], 32
    $region17: #{tpu_custom_call.1} parent=1 // pred_fallthru
      _
    %s49 = sadd.s32 0, 0
    %p50 = scmp.lt.s32.totalorder %s49, 0
    %s51 = scalar_select %p50, %s49, 0
    %s52 = sadd.s32 0, 0
    %p53 = scmp.lt.s32.totalorder %s52, 0
    %s54 = scalar_select %p53, %s52, 0
    %p55 = scmp.eq.s32.totalorder 0, 0
    // Predicated region
    $region18: #{tpu_custom_call.1} parent=1 // pred_check
      %p56 = pneg %p55
    $region19: #{tpu_custom_call.1} parent=1 // pred_check_branch
      %58 = sbr.rel (%p56) target = $region21
    $region20: #{tpu_custom_call.1} parent=1 // pred_region
      %vm59 = vcmask 1024
      %60 = vst.msk [vmem:[%s2] sm:$0x3] %vm59, 0.0
    $region21: #{tpu_custom_call.1} parent=1 // pred_fallthru
      _
    %v61 = vld [vmem:[#allocation2] sm:$0x3]
    %v62 = vld [vmem:[#allocation4] sm:$0x3]
    %v63 = vmul.f32 %v61, %v62
    %v64 = vld [vmem:[%s2] sm:$0x3]
    %vm65 = vcmask 1041408
    %v66 = vsel %vm65, %v63, 0.0
    %67 = vadd.xlane.f32.xlu0 %v66
    %v68 = vpop.xlane.xlu0 %67
    %v69 = vadd.f32 %v64, %v68
    %vm70 = vcmask 1024
    %71 = vst.msk [vmem:[%s2] sm:$0x3] %vm70, %v69
    // Predicated region
    $region22: #{tpu_custom_call.1} parent=1 // pred_check
      _
    $region23: #{tpu_custom_call.1} parent=1 // pred_check_branch
      %73 = sbr.rel (0) target = $region25
    $region24: #{tpu_custom_call.1} parent=1 // pred_region
      _
    $region25: #{tpu_custom_call.1} parent=1 // pred_fallthru
      _
    // Predicated region
    $region26: #{tpu_custom_call.1} parent=1 // pred_check
      _
    $region27: #{tpu_custom_call.1} parent=1 // pred_check_branch
      %75 = sbr.rel (0) target = $region29
    $region28: #{tpu_custom_call.1} parent=1 // pred_region
      _
    $region29: #{tpu_custom_call.1} parent=1 // pred_fallthru
      _
    %76 = vsyncpa [#allocation3], 1
    %77 = vsyncpa [#allocation5], 1

</llo_original>
